<compile_context>
chip_gen: v7x
topology: tpu7x:2x2x1
jax: 0.10.0
libtpu: 0.0.40
codegen_flags: <defaults>
</compile_context>

<pallas_src>
import functools
import math

import jax
import jax.numpy as jnp
from jax.experimental import pallas as pl
from jax.experimental.pallas import tpu as pltpu

_SQRT_HALF = 1.0 / math.sqrt(2.0)


def _gelu(x, approximate):
    if approximate:
        # tanh approximation routes the transcendental to the EUP (opt-in:
        # torch's default nn.GELU() is the exact erf form).
        return jax.nn.gelu(x, approximate=True)
    return 0.5 * x * (1.0 + jax.lax.erf(x * _SQRT_HALF))


def _ffn_ln_kernel(x_ref, g_ref, beta_ref, w1_ref, b1_ref, w2_ref, b2_ref,
                   o_ref, a_scr, acc_scr, *, eps, approximate_gelu):
    """One (batch, token-block, hidden-chunk) grid step.

    x_ref  : (C, TN)   activations, channels on sublanes, tokens on lanes
    g_ref  : (C, 1)    LayerNorm gamma        beta_ref: (C, 1) LayerNorm beta
    w1_ref : (HK, C)   fc1 weight chunk (bf16), b1_ref: (HK, 1) fc1 bias chunk
    w2_ref : (C, HK)   fc2 weight chunk (bf16), b2_ref: (C, 1)  fc2 bias
    a_scr  : (C, TN)   bf16 scratch (LayerNorm'd activations)
    acc_scr: (C, TN)   f32 scratch (fc2 accumulator)
    """
    h_idx = pl.program_id(2)

    # -- first hidden chunk: LayerNorm over channels, init the accumulator ----
    @pl.when(h_idx == 0)
    def _():
        x = x_ref[...].astype(jnp.float32)                       # (C, TN)
        mean = jnp.mean(x, axis=0, keepdims=True)                # (1, TN)
        xc = x - mean
        var = jnp.mean(xc * xc, axis=0, keepdims=True)
        a = xc * jax.lax.rsqrt(var + eps) * g_ref[...] + beta_ref[...]
        a_scr[...] = a.astype(a_scr.dtype)                       # bf16 for MXU
        acc_scr[...] = jnp.zeros_like(acc_scr)

    # -- fc1 chunk + GELU: (HK, C) @ (C, TN) -> (HK, TN), f32 accumulation ----
    hblk = jnp.dot(w1_ref[...], a_scr[...],
                   preferred_element_type=jnp.float32) + b1_ref[...]
    hblk = _gelu(hblk, approximate_gelu)

    # -- fc2 chunk accumulate: (C, HK) @ (HK, TN) -> (C, TN) ------------------
    acc_scr[...] += jnp.dot(w2_ref[...], hblk.astype(jnp.bfloat16),
                            preferred_element_type=jnp.float32)

    # -- last hidden chunk: add fc2 bias, emit the lane-dense token block -----
    @pl.when(h_idx == pl.num_programs(2) - 1)
    def _():
        o_ref[...] = (acc_scr[...] + b2_ref[...]).astype(o_ref.dtype)


def _ceil_to(x, m):
    return ((x + m - 1) // m) * m


def _vmem_limit_bytes():
    """Generation-aware scoped-VMEM limit (defaults are only 16/32 MiB)."""
    try:
        cap = int(pltpu.get_tpu_info().vmem_capacity_bytes)
    except Exception:                      # pragma: no cover - query unavailable
        cap = 64 * 1024 * 1024             # conservative (v7x-sized) fallback
    return int(min(cap * 3 // 4, 100 * 1024 * 1024))


def _choose_hidden_block(hidden):
    """Hidden (=3C) chunk size: multiple of 128 (it sits on w2's lane axis)
    that divides 3C; otherwise a single full-extent chunk."""
    for cand in (512, 384, 256, 128):
        if hidden % cand == 0:
            return cand
    return hidden


def _choose_token_block(C, HW, hk, budget_bytes):
    """Largest lane-dense token block whose working set fits the VMEM budget.
    Prefers 256-multiples (full v6e/v7x MXU-N); 128 only as a fallback."""
    hw_cap = max(128, _ceil_to(HW, 128))
    # Per-token live bytes: double-buffered f32 in/out tiles (16C), bf16 + f32
    # scratch (6C), and the (hk, tn) f32+bf16 fc1 intermediate (6*hk).
    per_tok = 22 * C + 6 * hk
    # Fixed bytes: double-buffered bf16 weight chunks + lane-padded bias vectors.
    fixed = 8 * hk * C + 2 * hk * 512 + 6 * C * 512

    def fits(tn):
        return fixed + per_tok * tn <= budget_bytes

    for tn in (2048, 1024, 512, 256, 128):        # exact divisors (no padding)
        if tn <= HW and HW % tn == 0 and fits(tn):
            return tn
    for tn in (2048, 1024, 512, 256, 128):        # otherwise pad HW up to tn
        if tn <= hw_cap and fits(tn):
            return tn
    return 128


def feedforward_ln(x, params, eps=1e-5, approximate_gelu=False):
    """Pallas forward of FeedForward_LN.  x: (B, C, H, W) NCHW (f32 or bf16)."""
    B, C, H, W = x.shape
    HW = H * W
    hidden = params["w1"].shape[0]                   # 3 * C

    vmem_limit = _vmem_limit_bytes()
    hk = _choose_hidden_block(hidden)
    tn = _choose_token_block(C, HW, hk, budget_bytes=(vmem_limit * 3) // 4)
    n_tok = -(-HW // tn)

    # v7x megacore: keep >= 2 parallel grid steps when the shape allows it.
    while B * n_tok < 2 and tn > 128:
        tn //= 2
        n_tok = -(-HW // tn)
    hw_pad = n_tok * tn
    n_h = hidden // hk

    gamma = params["gamma"].reshape(C, 1).astype(jnp.float32)
    beta = params["beta"].reshape(C, 1).astype(jnp.float32)
    w1 = params["w1"].astype(jnp.bfloat16)                       # (3C, C)
    b1 = params["b1"].reshape(hidden, 1).astype(jnp.float32)
    w2 = params["w2"].astype(jnp.bfloat16)                       # (C, 3C)
    b2 = params["b2"].reshape(C, 1).astype(jnp.float32)

    # NCHW -> (B, C, H*W): channels on sublanes, tokens on lanes.  The permutes
    # of the PyTorch module become free reshapes (no transpose materialized).
    x3 = x.reshape(B, C, HW)
    if hw_pad != HW:
        x3 = jnp.pad(x3, ((0, 0), (0, 0), (0, hw_pad - HW)))

    out3 = pl.pallas_call(
        functools.partial(_ffn_ln_kernel, eps=eps,
                          approximate_gelu=approximate_gelu),
        out_shape=jax.ShapeDtypeStruct((B, C, hw_pad), x.dtype),
        grid=(B, n_tok, n_h),
        in_specs=[
            pl.BlockSpec((None, C, tn), lambda b, t, h: (b, 0, t)),  # x slab
            pl.BlockSpec((C, 1), lambda b, t, h: (0, 0)),            # LN gamma
            pl.BlockSpec((C, 1), lambda b, t, h: (0, 0)),            # LN beta
            pl.BlockSpec((hk, C), lambda b, t, h: (h, 0)),           # fc1 W chunk
            pl.BlockSpec((hk, 1), lambda b, t, h: (h, 0)),           # fc1 b chunk
            pl.BlockSpec((C, hk), lambda b, t, h: (0, h)),           # fc2 W chunk
            pl.BlockSpec((C, 1), lambda b, t, h: (0, 0)),            # fc2 bias
        ],
        out_specs=pl.BlockSpec((None, C, tn), lambda b, t, h: (b, 0, t)),
        scratch_shapes=[
            pltpu.VMEM((C, tn), jnp.bfloat16),       # LayerNorm'd activations
            pltpu.VMEM((C, tn), jnp.float32),        # fc2 accumulator
        ],
        compiler_params=pltpu.CompilerParams(
            dimension_semantics=("parallel", "parallel", "arbitrary"),
            vmem_limit_bytes=vmem_limit),
    )(x3, gamma, beta, w1, b1, w2, b2)

    if hw_pad != HW:
        out3 = out3[:, :, :HW]
    return out3.reshape(B, C, H, W)


def reference(x, params, eps=1e-5):
    """Pure-JAX mirror of the PyTorch forward (for validation)."""
    t = jnp.transpose(x, (0, 2, 3, 1))                          # (B,H,W,C)
    mu = jnp.mean(t, axis=-1, keepdims=True)
    var = jnp.mean((t - mu) ** 2, axis=-1, keepdims=True)       # biased, as torch
    t = (t - mu) * jax.lax.rsqrt(var + eps) * params["gamma"] + params["beta"]
    h = _gelu(t @ params["w1"].T + params["b1"], approximate=False)
    y = h @ params["w2"].T + params["b2"]                       # (B,H,W,C)
    return jnp.transpose(y, (0, 3, 1, 2))                       # back to NCHW


if __name__ == "__main__":
    B, C, H, W = 2, 4, 16, 16
    hidden = 3 * C
    key = jax.random.PRNGKey(0)
    keys = jax.random.split(key, 7)
    x = jax.random.normal(keys[0], (B, C, H, W), dtype=jnp.float32)
    params = dict(
        gamma=1.0 + 0.1 * jax.random.normal(keys[1], (C,), dtype=jnp.float32),
        beta=0.1 * jax.random.normal(keys[2], (C,), dtype=jnp.float32),
        w1=jax.random.normal(keys[3], (hidden, C), dtype=jnp.float32) / math.sqrt(C),
        b1=0.1 * jax.random.normal(keys[4], (hidden,), dtype=jnp.float32),
        w2=jax.random.normal(keys[5], (C, hidden), dtype=jnp.float32) / math.sqrt(hidden),
        b2=0.1 * jax.random.normal(keys[6], (C,), dtype=jnp.float32),
    )

    out = jax.block_until_ready(feedforward_ln(x, params))
    ref = jax.block_until_ready(reference(x, params))

    assert out.shape == (B, C, H, W)
    err = float(jnp.max(jnp.abs(out - ref)))
    # tolerance sized for bf16 MXU operands with f32 accumulation
    assert err < 5e-2, f"max abs err too large: {err}"
    print("KERNEL_OK")
</pallas_src>

<mosaic_0001>
module attributes {stable_mosaic.version = 11 : i64} {
  func.func @_ffn_ln_kernel(%arg0: i32, %arg1: i32, %arg2: i32, %arg3: memref<1x4x256xf32, #tpu.memory_space<vmem>>, %arg4: memref<4x1xf32, #tpu.memory_space<vmem>>, %arg5: memref<4x1xf32, #tpu.memory_space<vmem>>, %arg6: memref<12x4xbf16, #tpu.memory_space<vmem>>, %arg7: memref<12x1xf32, #tpu.memory_space<vmem>>, %arg8: memref<4x12xbf16, #tpu.memory_space<vmem>>, %arg9: memref<4x1xf32, #tpu.memory_space<vmem>>, %arg10: memref<1x4x256xf32, #tpu.memory_space<vmem>>, %arg11: memref<4x256xbf16, #tpu.memory_space<vmem>>, %arg12: memref<4x256xf32, #tpu.memory_space<vmem>>) attributes {dimension_semantics = [#tpu.dimension_semantics<parallel>, #tpu.dimension_semantics<parallel>, #tpu.dimension_semantics<arbitrary>], iteration_bounds = array<i64: 2, 1, 1>, scalar_prefetch = 0 : i64, scratch_operands = 2 : i64, tpu.core_type = #tpu.core_type<tc>, window_params = [{transform_indices = @transform_0, window_bounds = array<i64: 1, 4, 256>}, {pipeline_mode = #tpu.pipeline_mode<synchronous>, transform_indices = @transform_1, window_bounds = array<i64: 4, 1>}, {pipeline_mode = #tpu.pipeline_mode<synchronous>, transform_indices = @transform_2, window_bounds = array<i64: 4, 1>}, {transform_indices = @transform_3, window_bounds = array<i64: 12, 4>}, {transform_indices = @transform_4, window_bounds = array<i64: 12, 1>}, {transform_indices = @transform_5, window_bounds = array<i64: 4, 12>}, {pipeline_mode = #tpu.pipeline_mode<synchronous>, transform_indices = @transform_6, window_bounds = array<i64: 4, 1>}, {transform_indices = @transform_7, window_bounds = array<i64: 1, 4, 256>}]} {
    %c0_i32 = arith.constant 0 : i32
    %0 = arith.cmpi eq, %arg2, %c0_i32 : i32
    %1 = arith.extui %0 : i1 to i32
    %c0_i32_0 = arith.constant 0 : i32
    %2 = arith.cmpi ne, %1, %c0_i32_0 : i32
    scf.if %2 {
      %c0_18 = arith.constant 0 : index
      %c0_19 = arith.constant 0 : index
      %c0_20 = arith.constant 0 : index
      %26 = vector.load %arg3[%c0_18, %c0_19, %c0_20] : memref<1x4x256xf32, #tpu.memory_space<vmem>>, vector<1x4x256xf32>
      %27 = vector.shape_cast %26 : vector<1x4x256xf32> to vector<4x256xf32>
      %cst_21 = arith.constant dense<0.000000e+00> : vector<256xf32>
      %28 = vector.multi_reduction <add>, %27, %cst_21 [0] : vector<4x256xf32> to vector<256xf32>
      %29 = vector.shape_cast %28 : vector<256xf32> to vector<1x256xf32>
      %cst_22 = arith.constant 4.000000e+00 : f32
      %30 = vector.broadcast %cst_22 : f32 to vector<1x256xf32>
      %31 = arith.divf %29, %30 : vector<1x256xf32>
      %32 = vector.broadcast %31 : vector<1x256xf32> to vector<4x256xf32>
      %33 = arith.subf %27, %32 : vector<4x256xf32>
      %34 = arith.mulf %33, %33 : vector<4x256xf32>
      %cst_23 = arith.constant dense<0.000000e+00> : vector<256xf32>
      %35 = vector.multi_reduction <add>, %34, %cst_23 [0] : vector<4x256xf32> to vector<256xf32>
      %36 = vector.shape_cast %35 : vector<256xf32> to vector<1x256xf32>
      %cst_24 = arith.constant 4.000000e+00 : f32
      %37 = vector.broadcast %cst_24 : f32 to vector<1x256xf32>
      %38 = arith.divf %36, %37 : vector<1x256xf32>
      %cst_25 = arith.constant 9.99999974E-6 : f32
      %39 = vector.broadcast %cst_25 : f32 to vector<1x256xf32>
      %40 = arith.addf %38, %39 : vector<1x256xf32>
      %41 = math.rsqrt %40 : vector<1x256xf32>
      %42 = vector.broadcast %41 : vector<1x256xf32> to vector<4x256xf32>
      %43 = arith.mulf %33, %42 : vector<4x256xf32>
      %c0_26 = arith.constant 0 : index
      %c0_27 = arith.constant 0 : index
      %44 = vector.load %arg4[%c0_26, %c0_27] : memref<4x1xf32, #tpu.memory_space<vmem>>, vector<4x1xf32>
      %45 = vector.broadcast %44 : vector<4x1xf32> to vector<4x256xf32>
      %46 = arith.mulf %43, %45 : vector<4x256xf32>
      %c0_28 = arith.constant 0 : index
      %c0_29 = arith.constant 0 : index
      %47 = vector.load %arg5[%c0_28, %c0_29] : memref<4x1xf32, #tpu.memory_space<vmem>>, vector<4x1xf32>
      %48 = vector.broadcast %47 : vector<4x1xf32> to vector<4x256xf32>
      %49 = arith.addf %46, %48 : vector<4x256xf32>
      %50 = arith.truncf %49 : vector<4x256xf32> to vector<4x256xbf16>
      %c0_30 = arith.constant 0 : index
      %c0_31 = arith.constant 0 : index
      %51 = vector.load %arg11[%c0_30, %c0_31] : memref<4x256xbf16, #tpu.memory_space<vmem>>, vector<4x256xbf16>
      tpu.vector_store %arg11[%c0_30, %c0_31], %50 {strides = array<i32>} : memref<4x256xbf16, #tpu.memory_space<vmem>>, vector<4x256xbf16>,
      %cst_32 = arith.constant 0.000000e+00 : f32
      %52 = vector.broadcast %cst_32 : f32 to vector<4x256xf32>
      %c0_33 = arith.constant 0 : index
      %c0_34 = arith.constant 0 : index
      %53 = vector.load %arg12[%c0_33, %c0_34] : memref<4x256xf32, #tpu.memory_space<vmem>>, vector<4x256xf32>
      tpu.vector_store %arg12[%c0_33, %c0_34], %52 {strides = array<i32>} : memref<4x256xf32, #tpu.memory_space<vmem>>, vector<4x256xf32>,
    } else {
    }
    %c0 = arith.constant 0 : index
    %c0_1 = arith.constant 0 : index
    %3 = vector.load %arg6[%c0, %c0_1] : memref<12x4xbf16, #tpu.memory_space<vmem>>, vector<12x4xbf16>
    %c0_2 = arith.constant 0 : index
    %c0_3 = arith.constant 0 : index
    %4 = vector.load %arg11[%c0_2, %c0_3] : memref<4x256xbf16, #tpu.memory_space<vmem>>, vector<4x256xbf16>
    %cst = arith.constant dense<0.000000e+00> : vector<12x256xf32>
    %5 = tpu.matmul %3, %4, %cst {dimension_numbers = #tpu.dot_dimension_numbers<[1], [0], [0], [1], [0, 0, 1, 1], [], []>} : vector<12x4xbf16>, vector<4x256xbf16>, vector<12x256xf32> -> vector<12x256xf32>
    %c0_4 = arith.constant 0 : index
    %c0_5 = arith.constant 0 : index
    %6 = vector.load %arg7[%c0_4, %c0_5] : memref<12x1xf32, #tpu.memory_space<vmem>>, vector<12x1xf32>
    %7 = vector.broadcast %6 : vector<12x1xf32> to vector<12x256xf32>
    %8 = arith.addf %5, %7 : vector<12x256xf32>
    %cst_6 = arith.constant 5.000000e-01 : f32
    %9 = vector.broadcast %cst_6 : f32 to vector<12x256xf32>
    %10 = arith.mulf %9, %8 : vector<12x256xf32>
    %cst_7 = arith.constant 0.707106769 : f32
    %11 = vector.broadcast %cst_7 : f32 to vector<12x256xf32>
    %12 = arith.mulf %8, %11 : vector<12x256xf32>
    %13 = math.erf %12 : vector<12x256xf32>
    %cst_8 = arith.constant 1.000000e+00 : f32
    %14 = vector.broadcast %cst_8 : f32 to vector<12x256xf32>
    %15 = arith.addf %14, %13 : vector<12x256xf32>
    %16 = arith.mulf %10, %15 : vector<12x256xf32>
    %c0_9 = arith.constant 0 : index
    %c0_10 = arith.constant 0 : index
    %17 = vector.load %arg12[%c0_9, %c0_10] : memref<4x256xf32, #tpu.memory_space<vmem>>, vector<4x256xf32>
    %c0_11 = arith.constant 0 : index
    %c0_12 = arith.constant 0 : index
    %18 = vector.load %arg8[%c0_11, %c0_12] : memref<4x12xbf16, #tpu.memory_space<vmem>>, vector<4x12xbf16>
    %19 = arith.truncf %16 : vector<12x256xf32> to vector<12x256xbf16>
    %cst_13 = arith.constant dense<0.000000e+00> : vector<4x256xf32>
    %20 = tpu.matmul %18, %19, %cst_13 {dimension_numbers = #tpu.dot_dimension_numbers<[1], [0], [0], [1], [0, 0, 1, 1], [], []>} : vector<4x12xbf16>, vector<12x256xbf16>, vector<4x256xf32> -> vector<4x256xf32>
    %21 = arith.addf %17, %20 : vector<4x256xf32>
    %c0_14 = arith.constant 0 : index
    %c0_15 = arith.constant 0 : index
    %22 = vector.load %arg12[%c0_14, %c0_15] : memref<4x256xf32, #tpu.memory_space<vmem>>, vector<4x256xf32>
    tpu.vector_store %arg12[%c0_14, %c0_15], %21 {strides = array<i32>} : memref<4x256xf32, #tpu.memory_space<vmem>>, vector<4x256xf32>,
    %c0_i32_16 = arith.constant 0 : i32
    %23 = arith.cmpi eq, %arg2, %c0_i32_16 : i32
    %24 = arith.extui %23 : i1 to i32
    %c0_i32_17 = arith.constant 0 : i32
    %25 = arith.cmpi ne, %24, %c0_i32_17 : i32
    scf.if %25 {
      %c0_18 = arith.constant 0 : index
      %c0_19 = arith.constant 0 : index
      %26 = vector.load %arg12[%c0_18, %c0_19] : memref<4x256xf32, #tpu.memory_space<vmem>>, vector<4x256xf32>
      %c0_20 = arith.constant 0 : index
      %c0_21 = arith.constant 0 : index
      %27 = vector.load %arg9[%c0_20, %c0_21] : memref<4x1xf32, #tpu.memory_space<vmem>>, vector<4x1xf32>
      %28 = vector.broadcast %27 : vector<4x1xf32> to vector<4x256xf32>
      %29 = arith.addf %26, %28 : vector<4x256xf32>
      %c0_22 = arith.constant 0 : index
      %c0_23 = arith.constant 0 : index
      %c0_24 = arith.constant 0 : index
      %30 = vector.load %arg10[%c0_22, %c0_23, %c0_24] : memref<1x4x256xf32, #tpu.memory_space<vmem>>, vector<1x4x256xf32>
      %31 = vector.shape_cast %30 : vector<1x4x256xf32> to vector<4x256xf32>
      %32 = vector.shape_cast %29 : vector<4x256xf32> to vector<1x4x256xf32>
      tpu.vector_store %arg10[%c0_22, %c0_23, %c0_24], %32 {strides = array<i32>} : memref<1x4x256xf32, #tpu.memory_space<vmem>>, vector<1x4x256xf32>,
    } else {
    }
    return
  }
  func.func @transform_0(%arg0: i32, %arg1: i32, %arg2: i32) -> (i32, i32, i32) {
    %c0_i32 = arith.constant 0 : i32
    %c0_i32_0 = arith.constant 0 : i32
    return %arg0, %c0_i32, %arg1 : i32, i32, i32
  }
  func.func @transform_1(%arg0: i32, %arg1: i32, %arg2: i32) -> (i32, i32) {
    %c0_i32 = arith.constant 0 : i32
    %c0_i32_0 = arith.constant 0 : i32
    %c0_i32_1 = arith.constant 0 : i32
    return %c0_i32, %c0_i32_0 : i32, i32
  }
  func.func @transform_2(%arg0: i32, %arg1: i32, %arg2: i32) -> (i32, i32) {
    %c0_i32 = arith.constant 0 : i32
    %c0_i32_0 = arith.constant 0 : i32
    %c0_i32_1 = arith.constant 0 : i32
    return %c0_i32, %c0_i32_0 : i32, i32
  }
  func.func @transform_3(%arg0: i32, %arg1: i32, %arg2: i32) -> (i32, i32) {
    %c0_i32 = arith.constant 0 : i32
    %c0_i32_0 = arith.constant 0 : i32
    return %arg2, %c0_i32 : i32, i32
  }
  func.func @transform_4(%arg0: i32, %arg1: i32, %arg2: i32) -> (i32, i32) {
    %c0_i32 = arith.constant 0 : i32
    %c0_i32_0 = arith.constant 0 : i32
    return %arg2, %c0_i32 : i32, i32
  }
  func.func @transform_5(%arg0: i32, %arg1: i32, %arg2: i32) -> (i32, i32) {
    %c0_i32 = arith.constant 0 : i32
    %c0_i32_0 = arith.constant 0 : i32
    return %c0_i32, %arg2 : i32, i32
  }
  func.func @transform_6(%arg0: i32, %arg1: i32, %arg2: i32) -> (i32, i32) {
    %c0_i32 = arith.constant 0 : i32
    %c0_i32_0 = arith.constant 0 : i32
    %c0_i32_1 = arith.constant 0 : i32
    return %c0_i32, %c0_i32_0 : i32, i32
  }
  func.func @transform_7(%arg0: i32, %arg1: i32, %arg2: i32) -> (i32, i32, i32) {
    %c0_i32 = arith.constant 0 : i32
    %c0_i32_0 = arith.constant 0 : i32
    return %arg0, %c0_i32, %arg1 : i32, i32, i32
  }
}

</mosaic_0001>

<llo_original>
// kernel: tpu_custom_call.1
$region0: #{tpu_custom_call.1}
  #allocation0 [shape = 'u32[]', space=smem, size = 0x4, offset = 0x4, fixed_abs, tag = 'smem constant byte address 0x4 - core index']
  #allocation1 [shape = 'u32[144,128]{1,0:T(1,128)}', space=vmem, size = 0x12000, scoped, tag = 'internal scratch']
  #allocation2 [shape = 'bf16[4,256]{1,0:T(4,128)(2,1)}', space=vmem, size = 0x800, scoped, tag = 'scratch operand']
  #allocation3 [shape = 'f32[4,256]{1,0:T(4,128)}', space=vmem, size = 0x1000, scoped, tag = 'scratch operand']
  %s0 = inlined_call_operand.vmem [shape: f32[2,4,256], index: 0, kind: input, shape index: {}]
  %s1 = inlined_call_operand.vmem [shape: f32[4,1], index: 1, kind: input, shape index: {}]
  %s2 = inlined_call_operand.vmem [shape: f32[4,1], index: 2, kind: input, shape index: {}]
  %s3 = inlined_call_operand.vmem [shape: bf16[12,4], index: 3, kind: input, shape index: {}]
  %s4 = inlined_call_operand.vmem [shape: f32[12,1], index: 4, kind: input, shape index: {}]
  %s5 = inlined_call_operand.vmem [shape: bf16[4,12], index: 5, kind: input, shape index: {}]
  %s6 = inlined_call_operand.vmem [shape: f32[4,1], index: 6, kind: input, shape index: {}]
  %s7 = inlined_call_operand.hbm [shape: f32[2,4,256], index: 7, kind: output, shape index: {}]
  %s8 = sld [smem:[#allocation0]]
  $region69: #{tpu_custom_call.1} parent=0
    _
  %s10 = ssub.s32 1, %s8
  %s11 = scalar_select 0, %s10, %s8
  $region1: #{tpu_custom_call.1} parent=0
    #allocation4 [shape = 'u8[8192]{0}', space=vmem, size = 0x2000, scoped, tag = 'output window, operand 0']
    #allocation5 [shape = 's32[2]{0}', space=sflag, size = 0x8, scoped, tag = 'scoped memory for tpu_custom_call.1']
    %12 = vsyncpa [#allocation5], 0
    %s13 = scalar_lea.sflag [#allocation5], 1
    %14 = vsyncpa %s13, 0
    loop: start=0, step=1, limit=4
    $region2: #{tpu_custom_call.1} parent=1 // loop_pre_header
      _
    $region3: #{tpu_custom_call.1} parent=1 // loop_header
      %s16 = sphi 0, %s20
      %p17 = scmp.ge.s32.totalorder %s16, 4
      %s23 = sphi 0, %s42
      %s24 = sphi 0, %s38
      %s25 = sphi 0, %s34
      %s26 = sphi 0, %s23
      %s27 = sphi 0, %s24
      %s28 = sphi 0, %s25
      %s29 = sphi 0, %s26
      %s30 = sphi 0, %s27
      %s31 = sphi 0, %s28
      %s47 = sphi 0, %s49
      %s50 = sphi 0, %s47
      %s51 = sphi 0, %s50
      %s67 = sphi 0, %s51
      %s71 = sphi 0, %s71
      %s73 = sphi 0, %s71
      %s74 = sphi 0, %s73
      %s88 = sphi 0, %s74
      %s92 = sphi 0, %s92
      %s94 = sphi 0, %s92
      %s95 = sphi 0, %s94
      %s109 = sphi 0, %s95
      %s115 = sphi 0, %s117
      %s118 = sphi 0, %s115
      %s119 = sphi 0, %s118
      %s135 = sphi 0, %s119
      %s141 = sphi 0, %s143
      %s144 = sphi 0, %s141
      %s145 = sphi 0, %s144
      %s161 = sphi 0, %s145
      %s167 = sphi 0, %s169
      %s170 = sphi 0, %s167
      %s171 = sphi 0, %s170
      %s187 = sphi 0, %s171
      %s191 = sphi 0, %s191
      %s193 = sphi 0, %s191
      %s194 = sphi 0, %s193
      %s208 = sphi 0, %s194
      %s216 = sphi 0, %s218
      %s219 = sphi 0, %s216
      %s220 = sphi 0, %s219
      %s236 = sphi 0, %s220
    $region4: #{tpu_custom_call.1} parent=1 // loop_header_branch
      %19 = sbr.rel (%p17) target = $region8
    $region5: #{tpu_custom_call.1} parent=1 // loop_body
      %s21 = ssub.s32 %s16, 1
      %s22 = ssub.s32 %s16, 2
      %s32 = sadd.s32 1, %s25
      %p33 = scmp.ge.s32.totalorder %s32, 1
      %s34 = scalar_select %p33, 0, %s32
      %s35 = sadd.s32 1, %s24
      %s36 = scalar_select %p33, %s35, %s24
      %p37 = scmp.ge.s32.totalorder %s36, 1
      %s38 = scalar_select %p37, 0, %s36
      %s39 = sadd.s32 1, %s23
      %s40 = scalar_select %p37, %s39, %s23
      %p41 = scmp.ge.s32.totalorder %s40, 2
      %s42 = scalar_select %p41, 0, %s40
      %s43 = ssub.s32 %s23, %s42
      %s44 = ssub.s32 %s24, %s38
      %s45 = sor.u32 %s43, %s44
      %p46 = scmp.eq.s32.totalorder %s45, 0
      %s48 = sadd.s32 %s47, 1
      %s49 = scalar_select %p46, %s47, %s48
      %p52 = pneg %p46
      %p53 = scmp.eq.s32.totalorder %s16, 1
      %p54 = por %p52, %p53
      %p55 = scmp.ne.s32.totalorder %s47, %s50
      %p56 = scmp.eq.s32.totalorder %s16, 0
      %p57 = por %p55, %p56
      %p58 = scmp.ne.s32.totalorder %s47, %s50
      %p59 = scmp.eq.s32.totalorder %s21, 1
      %p60 = por %p58, %p59
      %p61 = scmp.ne.s32.totalorder %s50, %s51
      %p62 = scmp.eq.s32.totalorder %s21, 0
      %p63 = por %p61, %p62
      %p64 = scmp.ne.s32.totalorder %s50, %s51
      %p65 = scmp.eq.s32.totalorder %s22, 1
      %p66 = por %p64, %p65
      %p68 = scmp.ne.s32.totalorder %s51, %s67
      %p69 = scmp.eq.s32.totalorder %s22, 0
      %p70 = por %p68, %p69
      %s72 = sadd.s32 %s71, 1
      %p75 = scmp.eq.s32.totalorder %s16, 1
      %p76 = scmp.ne.s32.totalorder %s71, %s73
      %p77 = scmp.eq.s32.totalorder %s16, 0
      %p78 = por %p76, %p77
      %p79 = scmp.ne.s32.totalorder %s71, %s73
      %p80 = scmp.eq.s32.totalorder %s21, 1
      %p81 = por %p79, %p80
      %p82 = scmp.ne.s32.totalorder %s73, %s74
      %p83 = scmp.eq.s32.totalorder %s21, 0
      %p84 = por %p82, %p83
      %p85 = scmp.ne.s32.totalorder %s73, %s74
      %p86 = scmp.eq.s32.totalorder %s22, 1
      %p87 = por %p85, %p86
      %p89 = scmp.ne.s32.totalorder %s74, %s88
      %p90 = scmp.eq.s32.totalorder %s22, 0
      %p91 = por %p89, %p90
      %s93 = sadd.s32 %s92, 1
      %p96 = scmp.eq.s32.totalorder %s16, 1
      %p97 = scmp.ne.s32.totalorder %s92, %s94
      %p98 = scmp.eq.s32.totalorder %s16, 0
      %p99 = por %p97, %p98
      %p100 = scmp.ne.s32.totalorder %s92, %s94
      %p101 = scmp.eq.s32.totalorder %s21, 1
      %p102 = por %p100, %p101
      %p103 = scmp.ne.s32.totalorder %s94, %s95
      %p104 = scmp.eq.s32.totalorder %s21, 0
      %p105 = por %p103, %p104
      %p106 = scmp.ne.s32.totalorder %s94, %s95
      %p107 = scmp.eq.s32.totalorder %s22, 1
      %p108 = por %p106, %p107
      %p110 = scmp.ne.s32.totalorder %s95, %s109
      %p111 = scmp.eq.s32.totalorder %s22, 0
      %p112 = por %p110, %p111
      %s113 = ssub.s32 %s25, %s34
      %p114 = scmp.eq.s32.totalorder %s113, 0
      %s116 = sadd.s32 %s115, 1
      %s117 = scalar_select %p114, %s115, %s116
      %p120 = pneg %p114
      %p121 = scmp.eq.s32.totalorder %s16, 1
      %p122 = por %p120, %p121
      %p123 = scmp.ne.s32.totalorder %s115, %s118
      %p124 = scmp.eq.s32.totalorder %s16, 0
      %p125 = por %p123, %p124
      %p126 = scmp.ne.s32.totalorder %s115, %s118
      %p127 = scmp.eq.s32.totalorder %s21, 1
      %p128 = por %p126, %p127
      %p129 = scmp.ne.s32.totalorder %s118, %s119
      %p130 = scmp.eq.s32.totalorder %s21, 0
      %p131 = por %p129, %p130
      %p132 = scmp.ne.s32.totalorder %s118, %s119
      %p133 = scmp.eq.s32.totalorder %s22, 1
      %p134 = por %p132, %p133
      %p136 = scmp.ne.s32.totalorder %s119, %s135
      %p137 = scmp.eq.s32.totalorder %s22, 0
      %p138 = por %p136, %p137
      %s139 = ssub.s32 %s25, %s34
      %p140 = scmp.eq.s32.totalorder %s139, 0
      %s142 = sadd.s32 %s141, 1
      %s143 = scalar_select %p140, %s141, %s142
      %p146 = pneg %p140
      %p147 = scmp.eq.s32.totalorder %s16, 1
      %p148 = por %p146, %p147
      %p149 = scmp.ne.s32.totalorder %s141, %s144
      %p150 = scmp.eq.s32.totalorder %s16, 0
      %p151 = por %p149, %p150
      %p152 = scmp.ne.s32.totalorder %s141, %s144
      %p153 = scmp.eq.s32.totalorder %s21, 1
      %p154 = por %p152, %p153
      %p155 = scmp.ne.s32.totalorder %s144, %s145
      %p156 = scmp.eq.s32.totalorder %s21, 0
      %p157 = por %p155, %p156
      %p158 = scmp.ne.s32.totalorder %s144, %s145
      %p159 = scmp.eq.s32.totalorder %s22, 1
      %p160 = por %p158, %p159
      %p162 = scmp.ne.s32.totalorder %s145, %s161
      %p163 = scmp.eq.s32.totalorder %s22, 0
      %p164 = por %p162, %p163
      %s165 = ssub.s32 %s25, %s34
      %p166 = scmp.eq.s32.totalorder %s165, 0
      %s168 = sadd.s32 %s167, 1
      %s169 = scalar_select %p166, %s167, %s168
      %p172 = pneg %p166
      %p173 = scmp.eq.s32.totalorder %s16, 1
      %p174 = por %p172, %p173
      %p175 = scmp.ne.s32.totalorder %s167, %s170
      %p176 = scmp.eq.s32.totalorder %s16, 0
      %p177 = por %p175, %p176
      %p178 = scmp.ne.s32.totalorder %s167, %s170
      %p179 = scmp.eq.s32.totalorder %s21, 1
      %p180 = por %p178, %p179
      %p181 = scmp.ne.s32.totalorder %s170, %s171
      %p182 = scmp.eq.s32.totalorder %s21, 0
      %p183 = por %p181, %p182
      %p184 = scmp.ne.s32.totalorder %s170, %s171
      %p185 = scmp.eq.s32.totalorder %s22, 1
      %p186 = por %p184, %p185
      %p188 = scmp.ne.s32.totalorder %s171, %s187
      %p189 = scmp.eq.s32.totalorder %s22, 0
      %p190 = por %p188, %p189
      %s192 = sadd.s32 %s191, 1
      %p195 = scmp.eq.s32.totalorder %s16, 1
      %p196 = scmp.ne.s32.totalorder %s191, %s193
      %p197 = scmp.eq.s32.totalorder %s16, 0
      %p198 = por %p196, %p197
      %p199 = scmp.ne.s32.totalorder %s191, %s193
      %p200 = scmp.eq.s32.totalorder %s21, 1
      %p201 = por %p199, %p200
      %p202 = scmp.ne.s32.totalorder %s193, %s194
      %p203 = scmp.eq.s32.totalorder %s21, 0
      %p204 = por %p202, %p203
      %p205 = scmp.ne.s32.totalorder %s193, %s194
      %p206 = scmp.eq.s32.totalorder %s22, 1
      %p207 = por %p205, %p206
      %p209 = scmp.ne.s32.totalorder %s194, %s208
      %p210 = scmp.eq.s32.totalorder %s22, 0
      %p211 = por %p209, %p210
      %s212 = ssub.s32 %s23, %s42
      %s213 = ssub.s32 %s24, %s38
      %s214 = sor.u32 %s212, %s213
      %p215 = scmp.eq.s32.totalorder %s214, 0
      %s217 = sadd.s32 %s216, 1
      %s218 = scalar_select %p215, %s216, %s217
      %p221 = pneg %p215
      %p222 = scmp.eq.s32.totalorder %s16, 1
      %p223 = por %p221, %p222
      %p224 = scmp.ne.s32.totalorder %s216, %s219
      %p225 = scmp.eq.s32.totalorder %s16, 0
      %p226 = por %p224, %p225
      %p227 = scmp.ne.s32.totalorder %s216, %s219
      %p228 = scmp.eq.s32.totalorder %s21, 1
      %p229 = por %p227, %p228
      %p230 = scmp.ne.s32.totalorder %s219, %s220
      %p231 = scmp.eq.s32.totalorder %s21, 0
      %p232 = por %p230, %p231
      %p233 = scmp.ne.s32.totalorder %s219, %s220
      %p234 = scmp.eq.s32.totalorder %s22, 1
      %p235 = por %p233, %p234
      %p237 = scmp.ne.s32.totalorder %s220, %s236
      %p238 = scmp.eq.s32.totalorder %s22, 0
      %p239 = por %p237, %p238
      %p240 = scmp.le.s32.totalorder 1, %s16
      %p241 = scmp.lt.s32.totalorder %s16, 3
      %p242 = pnand %p240, %p241
      %p243 = pneg %p242
      // Predicated region
      $region9: #{tpu_custom_call.1} parent=5 // pred_check
        _
      $region10: #{tpu_custom_call.1} parent=5 // pred_check_branch
        %245 = sbr.rel (%p242) target = $region12
      $region11: #{tpu_custom_call.1} parent=5 // pred_region
        %s246 = ssub.s32 %s16, 1
        // Predicated region
        $region13: #{tpu_custom_call.1} parent=11 // pred_check
          %p247 = pneg %p84
        $region14: #{tpu_custom_call.1} parent=11 // pred_check_branch
          %249 = sbr.rel (%p247) target = $region16
        $region15: #{tpu_custom_call.1} parent=11 // pred_region
          _
        $region16: #{tpu_custom_call.1} parent=11 // pred_fallthru
          _
        // Predicated region
        $region17: #{tpu_custom_call.1} parent=11 // pred_check
          %p250 = pneg %p105
        $region18: #{tpu_custom_call.1} parent=11 // pred_check_branch
          %252 = sbr.rel (%p250) target = $region20
        $region19: #{tpu_custom_call.1} parent=11 // pred_region
          _
        $region20: #{tpu_custom_call.1} parent=11 // pred_fallthru
          _
        // Predicated region
        $region21: #{tpu_custom_call.1} parent=11 // pred_check
          %p253 = pneg %p131
        $region22: #{tpu_custom_call.1} parent=11 // pred_check_branch
          %255 = sbr.rel (%p253) target = $region24
        $region23: #{tpu_custom_call.1} parent=11 // pred_region
          %s256 = smul.u32 2, %s28
          %p257 = scmp.lt.s32.totalorder %s256, 1
          %s258 = scalar_select %p257, %s256, 1
          %s259 = smul.addr %s258, 4
          %s260 = scalar_lea.vmem %s3, %s259
          %s261 = smul.u32 2, %s28
        $region24: #{tpu_custom_call.1} parent=11 // pred_fallthru
          _
        // Predicated region
        $region25: #{tpu_custom_call.1} parent=11 // pred_check
          %p262 = pneg %p157
        $region26: #{tpu_custom_call.1} parent=11 // pred_check_branch
          %264 = sbr.rel (%p262) target = $region28
        $region27: #{tpu_custom_call.1} parent=11 // pred_region
          %s265 = smul.u32 2, %s28
          %p266 = scmp.lt.s32.totalorder %s265, 1
          %s267 = scalar_select %p266, %s265, 1
          %s268 = smul.addr %s267, 8
          %s269 = scalar_lea.vmem %s4, %s268
          %s270 = smul.u32 2, %s28
        $region28: #{tpu_custom_call.1} parent=11 // pred_fallthru
          _
        // Predicated region
        $region29: #{tpu_custom_call.1} parent=11 // pred_check
          %p271 = pneg %p183
        $region30: #{tpu_custom_call.1} parent=11 // pred_check_branch
          %273 = sbr.rel (%p271) target = $region32
        $region31: #{tpu_custom_call.1} parent=11 // pred_region
          %p274 = scmp.lt.s32.totalorder %s28, 0
          %s275 = scalar_select %p274, %s28, 0
          %s276 = smul.addr %s275, 2
          %s277 = scalar_lea.vmem %s5, %s276
        $region32: #{tpu_custom_call.1} parent=11 // pred_fallthru
          _
        // Predicated region
        $region33: #{tpu_custom_call.1} parent=11 // pred_check
          %p278 = pneg %p204
        $region34: #{tpu_custom_call.1} parent=11 // pred_check_branch
          %280 = sbr.rel (%p278) target = $region36
        $region35: #{tpu_custom_call.1} parent=11 // pred_region
          _
        $region36: #{tpu_custom_call.1} parent=11 // pred_fallthru
          _
      $region12: #{tpu_custom_call.1} parent=5 // pred_fallthru
        _
      %p281 = scmp.lt.s32.totalorder %s16, 2
      // Predicated region
      $region37: #{tpu_custom_call.1} parent=5 // pred_check
        %p282 = pneg %p281
      $region38: #{tpu_custom_call.1} parent=5 // pred_check_branch
        %284 = sbr.rel (%p282) target = $region40
      $region39: #{tpu_custom_call.1} parent=5 // pred_region
        // Predicated region
        $region41: #{tpu_custom_call.1} parent=39 // pred_check
          %p285 = pneg %p57
        $region42: #{tpu_custom_call.1} parent=39 // pred_check_branch
          %287 = sbr.rel (%p285) target = $region44
        $region43: #{tpu_custom_call.1} parent=39 // pred_region
          %s288 = smul.u32 2, %s24
          %p289 = scmp.lt.s32.totalorder %s23, 1
          %s290 = scalar_select %p289, %s23, 1
          %p291 = scmp.lt.s32.totalorder %s288, 1
          %s292 = scalar_select %p291, %s288, 1
          %s293 = smul.addr %s290, 2
          %s294 = sadd.s32 %s292, %s293
          %s295 = smul.addr %s294, 4
          %s296 = scalar_lea.vmem %s0, %s295
          %s297 = smul.u32 2, %s24
        $region44: #{tpu_custom_call.1} parent=39 // pred_fallthru
          _
      $region40: #{tpu_custom_call.1} parent=5 // pred_fallthru
        _
      %p298 = scmp.le.s32.totalorder 1, %s16
      %p299 = scmp.lt.s32.totalorder %s16, 3
      %p300 = pnand %p298, %p299
      %p301 = pneg %p300
      // Predicated region
      $region45: #{tpu_custom_call.1} parent=5 // pred_check
        _
      $region46: #{tpu_custom_call.1} parent=5 // pred_check_branch
        %303 = sbr.rel (%p300) target = $region48
      $region47: #{tpu_custom_call.1} parent=5 // pred_region
        %s304 = ssub.s32 %s16, 1
        %s305 = smul.u32 2, %s27
        %p306 = scmp.lt.s32.totalorder %s26, 1
        %s307 = scalar_select %p306, %s26, 1
        %p308 = scmp.lt.s32.totalorder %s305, 1
        %s309 = scalar_select %p308, %s305, 1
        %s310 = smul.addr %s307, 2
        %s311 = sadd.s32 %s309, %s310
        %s312 = smul.addr %s311, 4
        %s313 = scalar_lea.vmem %s0, %s312
        %p314 = pneg %p63
        %p315 = pneg %p60
        %p316 = pneg %p84
        %p317 = pneg %p81
        %p318 = pneg %p105
        %p319 = pneg %p102
        %s320 = smul.u32 2, %s28
        %p321 = scmp.lt.s32.totalorder %s320, 1
        %s322 = scalar_select %p321, %s320, 1
        %s323 = smul.addr %s322, 4
        %s324 = scalar_lea.vmem %s3, %s323
        %p325 = pneg %p131
        %p326 = pneg %p128
        %s327 = smul.u32 2, %s28
        %p328 = scmp.lt.s32.totalorder %s327, 1
        %s329 = scalar_select %p328, %s327, 1
        %s330 = smul.addr %s329, 8
        %s331 = scalar_lea.vmem %s4, %s330
        %p332 = pneg %p157
        %p333 = pneg %p154
        %p334 = scmp.lt.s32.totalorder %s28, 0
        %s335 = scalar_select %p334, %s28, 0
        %s336 = smul.addr %s335, 2
        %s337 = scalar_lea.vmem %s5, %s336
        %p338 = pneg %p183
        %p339 = pneg %p180
        %p340 = pneg %p204
        %p341 = pneg %p201
        %p342 = pneg %p232
        %p343 = pneg %p229
        %s344 = sand.u32 %s219, 1
        %s345 = scalar_lea.sflag [#allocation5], %s344
        %s346 = sand.u32 %s219, 1
        %s347 = smul.addr %s346, 8
        %s348 = scalar_lea.vmem [#allocation4], %s347
        %s349 = smul.u32 2, %s27
        %p350 = scmp.lt.s32.totalorder %s26, 1
        %s351 = scalar_select %p350, %s26, 1
        %p352 = scmp.lt.s32.totalorder %s349, 1
        %s353 = scalar_select %p352, %s349, 1
        %s354 = smul.addr %s351, 2
        %s355 = sadd.s32 %s353, %s354
        %s356 = smul.addr %s355, 4
        %s357 = scalar_lea.vmem %s0, %s356
        %s358 = smul.u32 2, %s27
        %s359 = smul.u32 2, %s28
        %p360 = scmp.lt.s32.totalorder %s359, 1
        %s361 = scalar_select %p360, %s359, 1
        %s362 = smul.addr %s361, 4
        %s363 = scalar_lea.vmem %s3, %s362
        %s364 = smul.u32 2, %s28
        %s365 = smul.u32 2, %s28
        %p366 = scmp.lt.s32.totalorder %s365, 1
        %s367 = scalar_select %p366, %s365, 1
        %s368 = smul.addr %s367, 8
        %s369 = scalar_lea.vmem %s4, %s368
        %s370 = smul.u32 2, %s28
        %p371 = scmp.lt.s32.totalorder %s28, 0
        %s372 = scalar_select %p371, %s28, 0
        %s373 = smul.addr %s372, 2
        %s374 = scalar_lea.vmem %s5, %s373
        %s375 = smul.u32 2, %s27
        %p377 = scmp.eq.s32.totalorder %s28, 0
        // Predicated region
        $region49: #{tpu_custom_call.1} parent=47 // pred_check
          %p378 = pneg %p377
        $region50: #{tpu_custom_call.1} parent=47 // pred_check_branch
          %380 = sbr.rel (%p378) target = $region52
        $region51: #{tpu_custom_call.1} parent=47 // pred_region
          %v381 = vld [vmem:[%s357] sm:$0xff]
          %v383 = vcombine.high %v381, %v381
          %vm385 = vcmask 1043456
          %v386 = vsel %vm385, %v381, 0.0
          %v387 = vrot.slane %v386, 4
          %v388 = vadd.f32 %v386, %v387
          %v389 = vrot.slane %v388, 2
          %v390 = vadd.f32 %v388, %v389
          %v391 = vrot.slane %v390, 1
          %v392 = vadd.f32 %v390, %v391
          %v393 = vsel %vm385, %v383, 0.0
          %v394 = vrot.slane %v393, 4
          %v395 = vadd.f32 %v393, %v394
          %v396 = vrot.slane %v395, 2
          %v397 = vadd.f32 %v395, %v396
          %v398 = vrot.slane %v397, 1
          %v399 = vadd.f32 %v397, %v398
          %v400 = vrcp.pop 4.0
          %v401 = vmul.f32 %v392, %v400
          %v402 = vmul.f32 %v399, %v400
          %v405 = vcombine.low %v401, %v402
          %v407 = vsub.f32 %v381, %v405
          %v408 = vmul.f32 %v407, %v407
          %v410 = vcombine.high %v408, %v408
          %v412 = vsel %vm385, %v408, 0.0
          %v413 = vrot.slane %v412, 4
          %v414 = vadd.f32 %v412, %v413
          %v415 = vrot.slane %v414, 2
          %v416 = vadd.f32 %v414, %v415
          %v417 = vrot.slane %v416, 1
          %v418 = vadd.f32 %v416, %v417
          %v419 = vsel %vm385, %v410, 0.0
          %v420 = vrot.slane %v419, 4
          %v421 = vadd.f32 %v419, %v420
          %v422 = vrot.slane %v421, 2
          %v423 = vadd.f32 %v421, %v422
          %v424 = vrot.slane %v423, 1
          %v425 = vadd.f32 %v423, %v424
          %v426 = vmul.f32 %v418, %v400
          %v427 = vmul.f32 %v425, %v400
          %v428 = vadd.f32 %v426, 1e-05
          %v429 = vadd.f32 %v427, 1e-05
          %v430 = vrsqrt.pop %v428
          %v431 = vrsqrt.pop %v429
          %v434 = vcombine.low %v430, %v431
          %v436 = vmul.f32 %v407, %v434
          %v437 = vld [vmem:[%s1] sm:$0xf]
          %439 = vset.pattern.permute.xlu0 0
          %440 = vperm.xlu0 %439, %v437
          %v441 = vpop.permute.xlu0 %440
          %v443 = vunpack.c.l.s4 839922192
          %v444 = vunpack.c.0.s8 %v443
          %v445 = vlaneseq
          %v446 = vshrl.u32 %v445, 7
          %v447 = vsub.s32 %v444, %v446
          %v448 = vrot.slane %v441, %v447
          %v450 = vmul.f32 %v436, %v448
          %v451 = vld [vmem:[%s2] sm:$0xf]
          %453 = vset.pattern.permute.xlu0 0
          %454 = vperm.xlu0 %453, %v451
          %v455 = vpop.permute.xlu0 %454
          %v457 = vunpack.c.l.s4 839922192
          %v458 = vunpack.c.0.s8 %v457
          %v459 = vlaneseq
          %v460 = vshrl.u32 %v459, 7
          %v461 = vsub.s32 %v458, %v460
          %v462 = vrot.slane %v455, %v461
          %v464 = vadd.f32 %v450, %v462
          %v466 = vcombine.high %v464, %v464
          %v468 = vpack.c.bf16 %v464, %v464
          %v469 = vpack.c.bf16 %v466, %v466
          %v472 = vcombine.low %v468, %v469
          %v474 = vunpack.c.l.s4 1983009808
          %v475 = vunpack.c.0.s8 %v474
          %v476 = vlaneseq
          %v477 = vshrl.u32 %v476, 7
          %v478 = vsub.s32 %v475, %v477
          %v479 = vrot.slane %v472, %v478
          %481 = vst [vmem:[#allocation2] sm:$0xf] %v479
          %482 = vst [vmem:[#allocation3] sm:$0xff] 0.0
        $region52: #{tpu_custom_call.1} parent=47 // pred_fallthru
          _
        %v483 = vld [vmem:[%s363] sm:$0xf]
        %v484 = vld [vmem:[%s363 + $0x4] sm:$0x3]
        %v485 = vld [vmem:[#allocation2] sm:$0xf]
        %v486 = vld [vmem:[%s369] sm:$0xff]
        %v487 = vld [vmem:[%s369 + $0x8] sm:$0xf]
        %489 = vset.pattern.permute.xlu0 0
        %490 = vperm.xlu0 %489, %v486
        %v491 = vpop.permute.xlu0 %490
        %494 = vset.pattern.permute.xlu0 0
        %495 = vperm.xlu0 %494, %v487
        %v496 = vpop.permute.xlu0 %495
        %v500 = vunpack.c.l.b16 %v483
        %v501 = vunpack.c.l.b16 %v484
        %v502 = vpack.c.b16 %v501, %v500
        %v505 = vunpack.c.l.s4 1983009808
        %v506 = vunpack.c.0.s8 %v505
        %v507 = vlaneseq
        %v508 = vshrl.u32 %v507, 7
        %v509 = vsub.s32 %v506, %v508
        %v510 = vrot.slane %v485, %v509
        %v511 = vcombine.high %v510, %v510
        %vm512 = vcmask 31744
        %v514 = vsel %vm512, %v502, 0
        %vm516 = vcmask 1041408
        %v518 = vsel %vm516, %v510, 0
        %v521 = vsel %vm516, %v511, 0
        %523 = vmatprep.subr.bf16.mxu0 %v521
        %524 = vmatpush1.bf16.msra.mxu0 %v518
        %525 = vmatprep.subr.bf16.mxu0 0
        %526 = vmatpush1.bf16.msra.mxu0 0
        %527 = vmatprep.subr.bf16.mxu0 0
        %528 = vmatpush1.bf16.msra.mxu0 0
        %529 = vmatprep.subr.bf16.mxu0 0
        %530 = vmatpush1.bf16.msra.mxu0 0
        %531 = vmatprep.subr.bf16.mxu0 0
        %532 = vmatpush1.bf16.msra.mxu0 0
        %533 = vmatprep.subr.bf16.mxu0 0
        %534 = vmatpush1.bf16.msra.mxu0 0
        %535 = vmatprep.subr.bf16.mxu0 0
        %536 = vmatpush1.bf16.msra.mxu0 0
        %537 = vmatprep.subr.bf16.mxu0 0
        %538 = vmatpush1.bf16.msra.mxu0 0
        %539 = vmatprep.subr.bf16.mxu0 0
        %540 = vmatpush1.bf16.msra.mxu0 0
        %541 = vmatprep.subr.bf16.mxu0 0
        %542 = vmatpush1.bf16.msra.mxu0 0
        %543 = vmatprep.subr.bf16.mxu0 0
        %544 = vmatpush1.bf16.msra.mxu0 0
        %545 = vmatprep.subr.bf16.mxu0 0
        %546 = vmatpush1.bf16.msra.mxu0 0
        %547 = vmatprep.subr.bf16.mxu0 0
        %548 = vmatpush1.bf16.msra.mxu0 0
        %549 = vmatprep.subr.bf16.mxu0 0
        %550 = vmatpush1.bf16.msra.mxu0 0
        %551 = vmatprep.subr.bf16.mxu0 0
        %552 = vmatpush1.bf16.msra.mxu0 0
        %553 = vmatprep.subr.bf16.mxu0 0
        %554 = vmatpush1.bf16.msra.mxu0 0
        %555 = vmatprep.mubr.bf16.mxu0 0
        %556 = vmatmul.mubr.bf16.gmra.mrb[0].mxu0 %v514
        %v557 = vpop.f32.mrb[0].mxu0
        %v558 = vadd.f32 %v491, %v557
        %v559 = vpop.f32.mrb[0].mxu0
        %v560 = vadd.f32 %v491, %v559
        %v561 = vpop.f32.mrb[0].mxu0
        %v562 = vadd.f32 %v496, %v561
        %v563 = vpop.f32.mrb[0].mxu0
        %v564 = vadd.f32 %v496, %v563
        %565 = vdwg.mxu0
        %v566 = vmul.f32 %v558, 0.5
        %v567 = vmul.f32 %v560, 0.5
        %v568 = vmul.f32 %v562, 0.5
        %v569 = vmul.f32 %v564, 0.5
        %v570 = vmul.f32 %v558, 0.70710677
        %v571 = vmul.f32 %v560, 0.70710677
        %v572 = vmul.f32 %v562, 0.70710677
        %v573 = vmul.f32 %v564, 0.70710677
        %v574 = verf.f32.pop %v570
        %v575 = verf.f32.pop %v571
        %v576 = verf.f32.pop %v572
        %v577 = verf.f32.pop %v573
        %v578 = vadd.f32 %v574, 1.0
        %v579 = vadd.f32 %v575, 1.0
        %v580 = vadd.f32 %v576, 1.0
        %v581 = vadd.f32 %v577, 1.0
        %v582 = vmul.f32 %v566, %v578
        %v583 = vmul.f32 %v567, %v579
        %v584 = vmul.f32 %v568, %v580
        %v585 = vmul.f32 %v569, %v581
        %v586 = vld [vmem:[#allocation3] sm:$0xff]
        %v587 = vld [vmem:[%s374] sm:$0x3]
        %v588 = vpack.c.bf16 %v584, %v582
        %v589 = vpack.c.bf16 %v585, %v583
        %vm590 = vcmask 97280
        %v592 = vsel %vm590, %v587, 0
        %vm594 = vcmask 1045504
        %v596 = vsel %vm594, %v588, 0
        %v599 = vsel %vm594, %v589, 0
        %601 = vmatprep.subr.bf16.mxu0 %v599
        %602 = vmatpush1.bf16.msra.mxu0 %v596
        %603 = vmatprep.subr.bf16.mxu0 0
        %604 = vmatpush1.bf16.msra.mxu0 0
        %605 = vmatprep.subr.bf16.mxu0 0
        %606 = vmatpush1.bf16.msra.mxu0 0
        %607 = vmatprep.subr.bf16.mxu0 0
        %608 = vmatpush1.bf16.msra.mxu0 0
        %609 = vmatprep.subr.bf16.mxu0 0
        %610 = vmatpush1.bf16.msra.mxu0 0
        %611 = vmatprep.subr.bf16.mxu0 0
        %612 = vmatpush1.bf16.msra.mxu0 0
        %613 = vmatprep.subr.bf16.mxu0 0
        %614 = vmatpush1.bf16.msra.mxu0 0
        %615 = vmatprep.subr.bf16.mxu0 0
        %616 = vmatpush1.bf16.msra.mxu0 0
        %617 = vmatprep.subr.bf16.mxu0 0
        %618 = vmatpush1.bf16.msra.mxu0 0
        %619 = vmatprep.subr.bf16.mxu0 0
        %620 = vmatpush1.bf16.msra.mxu0 0
        %621 = vmatprep.subr.bf16.mxu0 0
        %622 = vmatpush1.bf16.msra.mxu0 0
        %623 = vmatprep.subr.bf16.mxu0 0
        %624 = vmatpush1.bf16.msra.mxu0 0
        %625 = vmatprep.subr.bf16.mxu0 0
        %626 = vmatpush1.bf16.msra.mxu0 0
        %627 = vmatprep.subr.bf16.mxu0 0
        %628 = vmatpush1.bf16.msra.mxu0 0
        %629 = vmatprep.subr.bf16.mxu0 0
        %630 = vmatpush1.bf16.msra.mxu0 0
        %631 = vmatprep.subr.bf16.mxu0 0
        %632 = vmatpush1.bf16.msra.mxu0 0
        %633 = vmatprep.mubr.bf16.mxu0 0
        %634 = vmatmul.mubr.bf16.gmra.mrb[0].mxu0 %v592
        %v635 = vpop.f32.mrb[0].mxu0
        %v636 = vadd.f32 0.0, %v635
        %v637 = vpop.f32.mrb[0].mxu0
        %v638 = vadd.f32 0.0, %v637
        %v639 = vpop.f32.mrb[0].mxu0
        %v640 = vpop.f32.mrb[0].mxu0
        %641 = vdwg.mxu0
        %v644 = vcombine.low %v636, %v638
        %v646 = vadd.f32 %v586, %v644
        %647 = vst [vmem:[#allocation3] sm:$0xff] %v646
        // Predicated region
        $region53: #{tpu_custom_call.1} parent=47 // pred_check
          %p648 = pneg %p377
        $region54: #{tpu_custom_call.1} parent=47 // pred_check_branch
          %650 = sbr.rel (%p648) target = $region56
        $region55: #{tpu_custom_call.1} parent=47 // pred_region
          %v651 = vld [vmem:[#allocation3] sm:$0xff]
          %v652 = vld [vmem:[%s6] sm:$0xf]
          %654 = vset.pattern.permute.xlu0 0
          %655 = vperm.xlu0 %654, %v652
          %v656 = vpop.permute.xlu0 %655
          %v658 = vunpack.c.l.s4 839922192
          %v659 = vunpack.c.0.s8 %v658
          %v660 = vlaneseq
          %v661 = vshrl.u32 %v660, 7
          %v662 = vsub.s32 %v659, %v661
          %v663 = vrot.slane %v656, %v662
          %v665 = vadd.f32 %v651, %v663
          %666 = vst [vmem:[%s348] sm:$0xff] %v665
        $region56: #{tpu_custom_call.1} parent=47 // pred_fallthru
          _
        %s667 = sand.u32 %s219, 1
        %s668 = scalar_lea.sflag [#allocation5], %s667
        %s669 = sand.u32 %s219, 1
        %s670 = smul.addr %s669, 8
        %s671 = scalar_lea.vmem [#allocation4], %s670
        // Predicated region
        $region57: #{tpu_custom_call.1} parent=47 // pred_check
          %p672 = pneg %p229
        $region58: #{tpu_custom_call.1} parent=47 // pred_check_branch
          %674 = sbr.rel (%p672) target = $region60
        $region59: #{tpu_custom_call.1} parent=47 // pred_region
          %s675 = smul.u32 2, %s27
          %s677 = ssub.s32 128, 128
          %678 = vsyncadd %s668, %s677
          %s679 = smul.addr %s26, 2
          %s680 = sadd.s32 %s675, %s679
          %s681 = smul.addr %s680, 64
          %s682 = scalar_lea.hbm %s7, %s681
          %s684 = sshll.u32 %s671, 4
          %s685 = int_to_ptr.vmem [resolvable:$true] %s684
          %687 = dma.vmem_to_hbm [thread:$0]  %s685, 128, %s682, %s668
        $region60: #{tpu_custom_call.1} parent=47 // pred_fallthru
          _
      $region48: #{tpu_custom_call.1} parent=5 // pred_fallthru
        _
      %p688 = scmp.le.s32.totalorder 2, %s16
      // Predicated region
      $region61: #{tpu_custom_call.1} parent=5 // pred_check
        %p689 = pneg %p688
      $region62: #{tpu_custom_call.1} parent=5 // pred_check_branch
        %691 = sbr.rel (%p689) target = $region64
      $region63: #{tpu_custom_call.1} parent=5 // pred_region
        %s692 = ssub.s32 %s16, 2
        // Predicated region
        $region65: #{tpu_custom_call.1} parent=63 // pred_check
          %p693 = pneg %p235
        $region66: #{tpu_custom_call.1} parent=63 // pred_check_branch
          %695 = sbr.rel (%p693) target = $region68
        $region67: #{tpu_custom_call.1} parent=63 // pred_region
          %s696 = sand.u32 %s220, 1
          %s697 = scalar_lea.sflag [#allocation5], %s696
          %s698 = sand.u32 %s220, 1
          %s699 = smul.addr %s698, 8
          %s700 = scalar_lea.vmem [#allocation4], %s699
          %701 = dma.done %s697, 128
        $region68: #{tpu_custom_call.1} parent=63 // pred_fallthru
          _
      $region64: #{tpu_custom_call.1} parent=5 // pred_fallthru
        _
    $region6: #{tpu_custom_call.1} parent=1 // loop_footer
      %s20 = sadd.s32 1, %s16
    $region7: #{tpu_custom_call.1} parent=1 // loop_footer_branch
      %15 = sbr.rel target = $region3
    $region8: #{tpu_custom_call.1} parent=1 // loop_exit
      _
    %702 = vsyncpa [#allocation5], 1
    %s703 = scalar_lea.sflag [#allocation5], 1
    %704 = vsyncpa %s703, 1

</llo_original>
